<compile_context>
chip_gen: v6e
topology: v6e:2x2x1
jax: 0.10.0
libtpu: 0.0.40
codegen_flags: <defaults>
</compile_context>

<pallas_src>
import jax
import jax.numpy as jnp
from jax.experimental import pallas as pl
from jax.experimental.pallas import tpu as pltpu


# ----------------------------------------------------------------------------
# Pallas kernel: per-pixel 1x1 convs (matmuls), channel-reduction cosine
# attention weight, and the elementwise re-weighting of im_feat.
# Layout: channels on sublanes, pixels on lanes.
# ----------------------------------------------------------------------------
def _pixel_atten_kernel(im_ref, xy_ref, w1i_ref, w1x_ref, b1_ref,
                        w2_ref, b2_ref, g_ref, cw_ref, out_ref, aw_ref):
    # im_ref  : (1, Cin, TP)   image features (stream dtype)
    # xy_ref  : (1, 2,  TP)    resized rel_coord (stream dtype)
    # w1i_ref : (A, Cin), w1x_ref: (A, 2)   -- 1x1 conv #1 weight, split (stream dtype)
    # b1_ref  : (A, 1)  f32
    # w2_ref  : (A, A), b2_ref: (A, 1) f32  -- 1x1 conv #2
    # g_ref   : (1, 1, A)  f32   glo_mlp(global_feat), pre-divided by ||g||
    # cw_ref  : (1, Cin, 1) f32  channel_mlp(global_feat) (or ones)
    im = im_ref[0]                                                     # (Cin, TP)
    xy = xy_ref[0]                                                     # (2,  TP)

    # feat_conv applied to cat([im, coord]) without materializing the concat;
    # both halves go through the MXU, accumulation in f32.
    q1 = jnp.dot(w1i_ref[...], im, preferred_element_type=jnp.float32)
    q1 = q1 + jnp.dot(w1x_ref[...], xy, preferred_element_type=jnp.float32)
    q1 = jnp.maximum(q1 + b1_ref[...], 0.0)                            # (A, TP) f32
    q = jnp.dot(w2_ref[...], q1,
                preferred_element_type=jnp.float32) + b2_ref[...]      # (A, TP) f32

    # g.q and ||q||^2: reductions over A routed through the MXU (1xA @ AxTP).
    g_row = g_ref[0]                                                   # (1, A)
    ones_row = jnp.ones((1, q.shape[0]), jnp.float32)
    dot = jnp.dot(g_row, q, preferred_element_type=jnp.float32)        # (1, TP)
    qsq = jnp.dot(ones_row, q * q, preferred_element_type=jnp.float32) # (1, TP)
    # eps only matters for an exactly-zero q (where dot==0 as well -> aw=0,
    # instead of the reference's NaN); invisible otherwise.
    aw = jnp.abs(dot) * jax.lax.rsqrt(qsq + 1e-20)                     # EUP rsqrt

    # Elementwise chain in f32 (v5e VPU has no bf16); single pass over im.
    im_f32 = im.astype(jnp.float32)
    out_ref[0] = (cw_ref[0] * aw * im_f32).astype(out_ref.dtype)       # (Cin, TP)
    aw_ref[0] = aw.astype(aw_ref.dtype)                                # (1, TP) lane-dense


# ----------------------------------------------------------------------------
# Glue: bilinear resize with align_corners=True (matches F.interpolate)
# ----------------------------------------------------------------------------
def _axis_coords(in_size, out_size):
    if out_size == 1:
        coords = jnp.zeros((1,), jnp.float32)
    else:
        coords = jnp.linspace(0.0, float(in_size - 1), out_size)
    lo = jnp.clip(jnp.floor(coords).astype(jnp.int32), 0, in_size - 1)
    hi = jnp.clip(lo + 1, 0, in_size - 1)
    frac = coords - lo.astype(jnp.float32)
    return lo, hi, frac


def bilinear_align_corners(x, H, W):
    # x: (B, C, h, w) -> (B, C, H, W)
    _, _, h, w = x.shape
    y0, y1, wy = _axis_coords(h, H)
    x0, x1, wx = _axis_coords(w, W)
    top = x[:, :, y0, :]
    bot = x[:, :, y1, :]

    def lerp_x(t):
        return t[:, :, :, x0] * (1.0 - wx) + t[:, :, :, x1] * wx

    rt = lerp_x(top)
    rb = lerp_x(bot)
    return rt * (1.0 - wy)[None, None, :, None] + rb * wy[None, None, :, None]


# ----------------------------------------------------------------------------
# Pixel-tile selection: byte-budgeted, lane-aligned, >= 2 parallel grid steps.
# ----------------------------------------------------------------------------
def _round_up(x, m):
    return ((x + m - 1) // m) * m


def _choose_tile(HW, Cin, B, stream_itemsize, target_block_bytes):
    # Tile so that the streamed im block is ~target_block_bytes.
    tp = target_block_bytes // max(Cin * stream_itemsize, 1)
    tp = (tp // 128) * 128
    tp = max(tp, 512)
    tp = min(tp, _round_up(HW, 128))
    tp = max(128, (tp // 128) * 128)
    # v7x has 2 TensorCores: keep the combined parallel grid extent >= 2.
    while B * ((HW + tp - 1) // tp) < 2 and tp > 128:
        tp = max(128, ((tp // 2) // 128) * 128)
    return tp


# ----------------------------------------------------------------------------
# Wrapper
# ----------------------------------------------------------------------------
def pixel_atten_forward(im_feat, global_feat, rel_coord, params,
                        use_channel_atten=True, global_detach=True,
                        stream_dtype=jnp.bfloat16, out_dtype=None,
                        target_block_bytes=2 << 20):
    B, Cin, H, W = im_feat.shape
    A = params["conv_b1"].shape[0]
    HW = H * W
    stream_dtype = jnp.dtype(stream_dtype)
    out_dtype = jnp.dtype(out_dtype) if out_dtype is not None else stream_dtype

    if global_detach:
        global_feat = jax.lax.stop_gradient(global_feat)

    # bilinear resize of rel_coord (glue, tiny)
    resize_coord = bilinear_align_corners(rel_coord.astype(jnp.float32), H, W)

    # NCHW stays NCHW -- flatten spatial dims, cast the streamed operands.
    im_p = im_feat.reshape(B, Cin, HW).astype(stream_dtype)
    xy_p = resize_coord.reshape(B, 2, HW).astype(stream_dtype)

    # Byte-budgeted pixel tile; pad HW to a multiple of the tile so every
    # block is lane-dense (no masked stores, no oversized fallback block).
    TP = _choose_tile(HW, Cin, B, stream_dtype.itemsize, target_block_bytes)
    HW_pad = _round_up(HW, TP)
    if HW_pad != HW:
        pad = HW_pad - HW
        im_p = jnp.pad(im_p, ((0, 0), (0, 0), (0, pad)))
        xy_p = jnp.pad(xy_p, ((0, 0), (0, 0), (0, pad)))

    # glo_mlp (tiny per-batch MLP, plain JAX glue); fold 1/||g|| into g so the
    # kernel only needs |dot| * rsqrt(||q||^2).
    g1 = jnp.maximum(global_feat @ params["glo_w1"].T + params["glo_b1"], 0.0)
    g = g1 @ params["glo_w2"].T + params["glo_b2"]                     # (B, A)
    g = g / jnp.linalg.norm(g, axis=1, keepdims=True)
    g_row = g.reshape(B, 1, A).astype(jnp.float32)

    # channel_mlp (tiny, plain JAX glue)
    if use_channel_atten:
        c = jnp.maximum(global_feat @ params["ch_w1"].T + params["ch_b1"], 0.0)
        c = jnp.maximum(c @ params["ch_w2"].T + params["ch_b2"], 0.0)
        cw = jax.nn.sigmoid(c @ params["ch_w3"].T + params["ch_b3"])   # (B, Cin)
    else:
        cw = jnp.ones((B, Cin), jnp.float32)
    cw = cw.reshape(B, Cin, 1).astype(jnp.float32)

    # 1x1 conv weights in (out, in) matmul form; split the coord columns off
    # so the concat never has to exist.  The two big-operand weights follow the
    # stream dtype so the MXU runs at its native (bf16) rate.
    w1 = params["conv_w1"].reshape(A, Cin + 2)
    w1_im = w1[:, :Cin].astype(stream_dtype)                           # (A, Cin)
    w1_xy = w1[:, Cin:].astype(stream_dtype)                           # (A, 2)
    w2 = params["conv_w2"].reshape(A, A).astype(jnp.float32)
    b1 = params["conv_b1"].reshape(A, 1).astype(jnp.float32)
    b2 = params["conv_b2"].reshape(A, 1).astype(jnp.float32)

    # Explicit VMEM limit: covers v5e's 16 MiB scoped default and stays well
    # under v7x's 64 MiB physical VMEM given the byte-budgeted tiles.
    isz, osz = stream_dtype.itemsize, out_dtype.itemsize
    block_bytes = TP * (Cin * (isz + osz) + 2 * isz + 4)
    vmem_limit = int(min(56 << 20, max(32 << 20, 2 * block_bytes + (4 << 20))))

    # TODO(synk): weights/biases/g/cw are grid-invariant; single-buffering them
    # (pipeline_mode=pl.Buffered(1)) or packing into one operand would reclaim
    # a few KiB of VMEM and DMA descriptors.
    out_p, aw_p = pl.pallas_call(
        _pixel_atten_kernel,
        out_shape=(
            jax.ShapeDtypeStruct((B, Cin, HW_pad), out_dtype),
            jax.ShapeDtypeStruct((B, 1, HW_pad), jnp.float32),
        ),
        grid=(B, HW_pad // TP),
        in_specs=[
            pl.BlockSpec((1, Cin, TP), lambda b, p: (b, 0, p)),
            pl.BlockSpec((1, 2, TP), lambda b, p: (b, 0, p)),
            pl.BlockSpec((A, Cin), lambda b, p: (0, 0)),
            pl.BlockSpec((A, 2), lambda b, p: (0, 0)),
            pl.BlockSpec((A, 1), lambda b, p: (0, 0)),
            pl.BlockSpec((A, A), lambda b, p: (0, 0)),
            pl.BlockSpec((A, 1), lambda b, p: (0, 0)),
            pl.BlockSpec((1, 1, A), lambda b, p: (b, 0, 0)),
            pl.BlockSpec((1, Cin, 1), lambda b, p: (b, 0, 0)),
        ],
        out_specs=[
            pl.BlockSpec((1, Cin, TP), lambda b, p: (b, 0, p)),
            pl.BlockSpec((1, 1, TP), lambda b, p: (b, 0, p)),
        ],
        compiler_params=pltpu.CompilerParams(
            dimension_semantics=("parallel", "parallel"),
            vmem_limit_bytes=vmem_limit),
    )(im_p, xy_p, w1_im, w1_xy, b1, w2, b2, g_row, cw)

    out_feat = out_p[:, :, :HW].reshape(B, Cin, H, W)
    atten_weight = aw_p[:, 0, :HW].reshape(B, H, W)
    return out_feat, atten_weight


# ----------------------------------------------------------------------------
# Deterministic parameter init (shapes from PixelAtten.__init__)
# ----------------------------------------------------------------------------
def init_params(key, in_channels, glo_channels, atten_channels):
    ks = jax.random.split(key, 14)
    n = lambda k, shp: 0.1 * jax.random.normal(k, shp, jnp.float32)
    return {
        # feat_conv: Conv2d(in+2 -> A, 1x1), ReLU, Conv2d(A -> A, 1x1)
        "conv_w1": n(ks[0], (atten_channels, in_channels + 2, 1, 1)),
        "conv_b1": n(ks[1], (atten_channels,)),
        "conv_w2": n(ks[2], (atten_channels, atten_channels, 1, 1)),
        "conv_b2": n(ks[3], (atten_channels,)),
        # glo_mlp: Linear(glo -> A), ReLU, Linear(A -> A)
        "glo_w1": n(ks[4], (atten_channels, glo_channels)),
        "glo_b1": n(ks[5], (atten_channels,)),
        "glo_w2": n(ks[6], (atten_channels, atten_channels)),
        "glo_b2": n(ks[7], (atten_channels,)),
        # channel_mlp: Linear(glo -> C), ReLU, Linear(C -> C), ReLU, Linear(C -> C), Sigmoid
        "ch_w1": n(ks[8], (in_channels, glo_channels)),
        "ch_b1": n(ks[9], (in_channels,)),
        "ch_w2": n(ks[10], (in_channels, in_channels)),
        "ch_b2": n(ks[11], (in_channels,)),
        "ch_w3": n(ks[12], (in_channels, in_channels)),
        "ch_b3": n(ks[13], (in_channels,)),
    }


# ----------------------------------------------------------------------------
# Pure-JAX reference (mirrors the PyTorch forward) for a correctness check
# ----------------------------------------------------------------------------
def pixel_atten_ref(im_feat, global_feat, rel_coord, params,
                    use_channel_atten=True):
    B, Cin, H, W = im_feat.shape
    A = params["conv_b1"].shape[0]
    resize_coord = bilinear_align_corners(rel_coord, H, W)
    cat = jnp.concatenate([im_feat, resize_coord], axis=1)             # (B, Cin+2, H, W)

    w1 = params["conv_w1"].reshape(A, Cin + 2)
    w2 = params["conv_w2"].reshape(A, A)
    q = jnp.einsum("oc,bchw->bohw", w1, cat,
                   preferred_element_type=jnp.float32) + params["conv_b1"][None, :, None, None]
    q = jnp.maximum(q, 0.0)
    q = jnp.einsum("oc,bchw->bohw", w2, q,
                   preferred_element_type=jnp.float32) + params["conv_b2"][None, :, None, None]

    g1 = jnp.maximum(global_feat @ params["glo_w1"].T + params["glo_b1"], 0.0)
    g = g1 @ params["glo_w2"].T + params["glo_b2"]                     # (B, A)

    aw = jnp.sum(g[:, :, None, None] * q, axis=1)
    aw = aw / jnp.linalg.norm(g, axis=1)[:, None, None]
    aw = aw / jnp.linalg.norm(q, axis=1)
    aw = jnp.abs(aw)

    if use_channel_atten:
        c = jnp.maximum(global_feat @ params["ch_w1"].T + params["ch_b1"], 0.0)
        c = jnp.maximum(c @ params["ch_w2"].T + params["ch_b2"], 0.0)
        cw = jax.nn.sigmoid(c @ params["ch_w3"].T + params["ch_b3"])
        out = cw[:, :, None, None] * aw[:, None] * im_feat
    else:
        out = aw[:, None] * im_feat
    return out, aw


if __name__ == "__main__":
    key = jax.random.PRNGKey(0)
    B, Cin, H, W = 2, 8, 16, 16
    glo_channels, atten_channels = 16, 32
    hc, wc = 8, 8                                            # rel_coord spatial size

    k_im, k_gl, k_rc, k_p = jax.random.split(key, 4)
    im_feat = jax.random.normal(k_im, (B, Cin, H, W), jnp.float32)
    global_feat = jax.random.normal(k_gl, (B, glo_channels), jnp.float32)
    rel_coord = jax.random.normal(k_rc, (B, 2, hc, wc), jnp.float32)
    params = init_params(k_p, Cin, glo_channels, atten_channels)

    ref_out, ref_aw = pixel_atten_ref(im_feat, global_feat, rel_coord, params,
                                      use_channel_atten=True)

    # f32 streaming path: tight check of the kernel math against the f32 ref.
    out_f32, aw_f32 = pixel_atten_forward(
        im_feat, global_feat, rel_coord, params,
        use_channel_atten=True, global_detach=True,
        stream_dtype=jnp.float32, out_dtype=jnp.float32)
    jax.block_until_ready((out_f32, aw_f32))
    assert out_f32.shape == (B, Cin, H, W)
    assert aw_f32.shape == (B, H, W)
    assert jnp.allclose(out_f32, ref_out, atol=2e-3, rtol=2e-3)
    assert jnp.allclose(aw_f32, ref_aw, atol=2e-3, rtol=2e-3)

    # bf16 streaming path (default, the performance configuration).
    out_feat, atten_weight = pixel_atten_forward(
        im_feat, global_feat, rel_coord, params,
        use_channel_atten=True, global_detach=True)
    jax.block_until_ready((out_feat, atten_weight))
    assert out_feat.shape == (B, Cin, H, W)
    assert atten_weight.shape == (B, H, W)
    assert out_feat.dtype == jnp.bfloat16
    assert jnp.allclose(out_feat.astype(jnp.float32), ref_out, atol=5e-2, rtol=5e-2)
    assert jnp.allclose(atten_weight, ref_aw, atol=5e-2, rtol=5e-2)

    print("KERNEL_OK")
</pallas_src>

<mosaic_0001>
module attributes {stable_mosaic.version = 11 : i64} {
  func.func @_pixel_atten_kernel(%arg0: i32, %arg1: i32, %arg2: memref<1x8x256xf32, #tpu.memory_space<vmem>>, %arg3: memref<1x2x256xf32, #tpu.memory_space<vmem>>, %arg4: memref<32x8xf32, #tpu.memory_space<vmem>>, %arg5: memref<32x2xf32, #tpu.memory_space<vmem>>, %arg6: memref<32x1xf32, #tpu.memory_space<vmem>>, %arg7: memref<32x32xf32, #tpu.memory_space<vmem>>, %arg8: memref<32x1xf32, #tpu.memory_space<vmem>>, %arg9: memref<1x1x32xf32, #tpu.memory_space<vmem>>, %arg10: memref<1x8x1xf32, #tpu.memory_space<vmem>>, %arg11: memref<1x8x256xf32, #tpu.memory_space<vmem>>, %arg12: memref<1x1x256xf32, #tpu.memory_space<vmem>>) attributes {dimension_semantics = [#tpu.dimension_semantics<parallel>, #tpu.dimension_semantics<parallel>], iteration_bounds = array<i64: 2, 1>, scalar_prefetch = 0 : i64, scratch_operands = 0 : i64, tpu.core_type = #tpu.core_type<tc>, window_params = [{transform_indices = @transform_0, window_bounds = array<i64: 1, 8, 256>}, {transform_indices = @transform_1, window_bounds = array<i64: 1, 2, 256>}, {pipeline_mode = #tpu.pipeline_mode<synchronous>, transform_indices = @transform_2, window_bounds = array<i64: 32, 8>}, {pipeline_mode = #tpu.pipeline_mode<synchronous>, transform_indices = @transform_3, window_bounds = array<i64: 32, 2>}, {pipeline_mode = #tpu.pipeline_mode<synchronous>, transform_indices = @transform_4, window_bounds = array<i64: 32, 1>}, {pipeline_mode = #tpu.pipeline_mode<synchronous>, transform_indices = @transform_5, window_bounds = array<i64: 32, 32>}, {pipeline_mode = #tpu.pipeline_mode<synchronous>, transform_indices = @transform_6, window_bounds = array<i64: 32, 1>}, {transform_indices = @transform_7, window_bounds = array<i64: 1, 1, 32>}, {transform_indices = @transform_8, window_bounds = array<i64: 1, 8, 1>}, {transform_indices = @transform_9, window_bounds = array<i64: 1, 8, 256>}, {transform_indices = @transform_10, window_bounds = array<i64: 1, 1, 256>}]} {
    %c0 = arith.constant 0 : index
    %c0_0 = arith.constant 0 : index
    %c0_1 = arith.constant 0 : index
    %0 = vector.load %arg2[%c0, %c0_0, %c0_1] : memref<1x8x256xf32, #tpu.memory_space<vmem>>, vector<1x8x256xf32>
    %1 = vector.shape_cast %0 : vector<1x8x256xf32> to vector<8x256xf32>
    %c0_2 = arith.constant 0 : index
    %c0_3 = arith.constant 0 : index
    %c0_4 = arith.constant 0 : index
    %2 = vector.load %arg3[%c0_2, %c0_3, %c0_4] : memref<1x2x256xf32, #tpu.memory_space<vmem>>, vector<1x2x256xf32>
    %3 = vector.shape_cast %2 : vector<1x2x256xf32> to vector<2x256xf32>
    %c0_5 = arith.constant 0 : index
    %c0_6 = arith.constant 0 : index
    %4 = vector.load %arg4[%c0_5, %c0_6] : memref<32x8xf32, #tpu.memory_space<vmem>>, vector<32x8xf32>
    %cst = arith.constant dense<0.000000e+00> : vector<32x256xf32>
    %5 = tpu.matmul %4, %1, %cst {dimension_numbers = #tpu.dot_dimension_numbers<[1], [0], [0], [1], [0, 0, 1, 1], [], []>} : vector<32x8xf32>, vector<8x256xf32>, vector<32x256xf32> -> vector<32x256xf32>
    %c0_7 = arith.constant 0 : index
    %c0_8 = arith.constant 0 : index
    %6 = vector.load %arg5[%c0_7, %c0_8] : memref<32x2xf32, #tpu.memory_space<vmem>>, vector<32x2xf32>
    %cst_9 = arith.constant dense<0.000000e+00> : vector<32x256xf32>
    %7 = tpu.matmul %6, %3, %cst_9 {dimension_numbers = #tpu.dot_dimension_numbers<[1], [0], [0], [1], [0, 0, 1, 1], [], []>} : vector<32x2xf32>, vector<2x256xf32>, vector<32x256xf32> -> vector<32x256xf32>
    %8 = arith.addf %5, %7 : vector<32x256xf32>
    %c0_10 = arith.constant 0 : index
    %c0_11 = arith.constant 0 : index
    %9 = vector.load %arg6[%c0_10, %c0_11] : memref<32x1xf32, #tpu.memory_space<vmem>>, vector<32x1xf32>
    %10 = vector.broadcast %9 : vector<32x1xf32> to vector<32x256xf32>
    %11 = arith.addf %8, %10 : vector<32x256xf32>
    %cst_12 = arith.constant 0.000000e+00 : f32
    %12 = vector.broadcast %cst_12 : f32 to vector<32x256xf32>
    %13 = arith.maximumf %11, %12 : vector<32x256xf32>
    %c0_13 = arith.constant 0 : index
    %c0_14 = arith.constant 0 : index
    %14 = vector.load %arg7[%c0_13, %c0_14] : memref<32x32xf32, #tpu.memory_space<vmem>>, vector<32x32xf32>
    %cst_15 = arith.constant dense<0.000000e+00> : vector<32x256xf32>
    %15 = tpu.matmul %14, %13, %cst_15 {dimension_numbers = #tpu.dot_dimension_numbers<[1], [0], [0], [1], [0, 0, 1, 1], [], []>} : vector<32x32xf32>, vector<32x256xf32>, vector<32x256xf32> -> vector<32x256xf32>
    %c0_16 = arith.constant 0 : index
    %c0_17 = arith.constant 0 : index
    %16 = vector.load %arg8[%c0_16, %c0_17] : memref<32x1xf32, #tpu.memory_space<vmem>>, vector<32x1xf32>
    %17 = vector.broadcast %16 : vector<32x1xf32> to vector<32x256xf32>
    %18 = arith.addf %15, %17 : vector<32x256xf32>
    %c0_18 = arith.constant 0 : index
    %c0_19 = arith.constant 0 : index
    %c0_20 = arith.constant 0 : index
    %19 = vector.load %arg9[%c0_18, %c0_19, %c0_20] : memref<1x1x32xf32, #tpu.memory_space<vmem>>, vector<1x1x32xf32>
    %20 = vector.shape_cast %19 : vector<1x1x32xf32> to vector<1x32xf32>
    %cst_21 = arith.constant 1.000000e+00 : f32
    %21 = vector.broadcast %cst_21 : f32 to vector<1x32xf32>
    %cst_22 = arith.constant dense<0.000000e+00> : vector<1x256xf32>
    %22 = tpu.matmul %20, %18, %cst_22 {dimension_numbers = #tpu.dot_dimension_numbers<[1], [0], [0], [1], [0, 0, 1, 1], [], []>} : vector<1x32xf32>, vector<32x256xf32>, vector<1x256xf32> -> vector<1x256xf32>
    %23 = arith.mulf %18, %18 : vector<32x256xf32>
    %cst_23 = arith.constant dense<0.000000e+00> : vector<1x256xf32>
    %24 = tpu.matmul %21, %23, %cst_23 {dimension_numbers = #tpu.dot_dimension_numbers<[1], [0], [0], [1], [0, 0, 1, 1], [], []>} : vector<1x32xf32>, vector<32x256xf32>, vector<1x256xf32> -> vector<1x256xf32>
    %25 = math.absf %22 : vector<1x256xf32>
    %cst_24 = arith.constant 9.99999968E-21 : f32
    %26 = vector.broadcast %cst_24 : f32 to vector<1x256xf32>
    %27 = arith.addf %24, %26 : vector<1x256xf32>
    %28 = math.rsqrt %27 : vector<1x256xf32>
    %29 = arith.mulf %25, %28 : vector<1x256xf32>
    %c0_25 = arith.constant 0 : index
    %c0_26 = arith.constant 0 : index
    %c0_27 = arith.constant 0 : index
    %30 = vector.load %arg10[%c0_25, %c0_26, %c0_27] : memref<1x8x1xf32, #tpu.memory_space<vmem>>, vector<1x8x1xf32>
    %31 = vector.shape_cast %30 : vector<1x8x1xf32> to vector<8x1xf32>
    %32 = vector.broadcast %31 : vector<8x1xf32> to vector<8x256xf32>
    %33 = vector.broadcast %29 : vector<1x256xf32> to vector<8x256xf32>
    %34 = arith.mulf %32, %33 : vector<8x256xf32>
    %35 = arith.mulf %34, %1 : vector<8x256xf32>
    %c0_28 = arith.constant 0 : index
    %c0_29 = arith.constant 0 : index
    %c0_30 = arith.constant 0 : index
    %36 = vector.load %arg11[%c0_28, %c0_29, %c0_30] : memref<1x8x256xf32, #tpu.memory_space<vmem>>, vector<1x8x256xf32>
    %37 = vector.shape_cast %36 : vector<1x8x256xf32> to vector<8x256xf32>
    %38 = vector.shape_cast %35 : vector<8x256xf32> to vector<1x8x256xf32>
    tpu.vector_store %arg11[%c0_28, %c0_29, %c0_30], %38 {strides = array<i32>} : memref<1x8x256xf32, #tpu.memory_space<vmem>>, vector<1x8x256xf32>,
    %c0_31 = arith.constant 0 : index
    %c0_32 = arith.constant 0 : index
    %c0_33 = arith.constant 0 : index
    %39 = vector.load %arg12[%c0_31, %c0_32, %c0_33] : memref<1x1x256xf32, #tpu.memory_space<vmem>>, vector<1x1x256xf32>
    %40 = vector.shape_cast %39 : vector<1x1x256xf32> to vector<1x256xf32>
    %41 = vector.shape_cast %29 : vector<1x256xf32> to vector<1x1x256xf32>
    tpu.vector_store %arg12[%c0_31, %c0_32, %c0_33], %41 {strides = array<i32>} : memref<1x1x256xf32, #tpu.memory_space<vmem>>, vector<1x1x256xf32>,
    return
  }
  func.func @transform_0(%arg0: i32, %arg1: i32) -> (i32, i32, i32) {
    %c0_i32 = arith.constant 0 : i32
    %c0_i32_0 = arith.constant 0 : i32
    return %arg0, %c0_i32, %arg1 : i32, i32, i32
  }
  func.func @transform_1(%arg0: i32, %arg1: i32) -> (i32, i32, i32) {
    %c0_i32 = arith.constant 0 : i32
    %c0_i32_0 = arith.constant 0 : i32
    return %arg0, %c0_i32, %arg1 : i32, i32, i32
  }
  func.func @transform_2(%arg0: i32, %arg1: i32) -> (i32, i32) {
    %c0_i32 = arith.constant 0 : i32
    %c0_i32_0 = arith.constant 0 : i32
    %c0_i32_1 = arith.constant 0 : i32
    return %c0_i32, %c0_i32_0 : i32, i32
  }
  func.func @transform_3(%arg0: i32, %arg1: i32) -> (i32, i32) {
    %c0_i32 = arith.constant 0 : i32
    %c0_i32_0 = arith.constant 0 : i32
    %c0_i32_1 = arith.constant 0 : i32
    return %c0_i32, %c0_i32_0 : i32, i32
  }
  func.func @transform_4(%arg0: i32, %arg1: i32) -> (i32, i32) {
    %c0_i32 = arith.constant 0 : i32
    %c0_i32_0 = arith.constant 0 : i32
    %c0_i32_1 = arith.constant 0 : i32
    return %c0_i32, %c0_i32_0 : i32, i32
  }
  func.func @transform_5(%arg0: i32, %arg1: i32) -> (i32, i32) {
    %c0_i32 = arith.constant 0 : i32
    %c0_i32_0 = arith.constant 0 : i32
    %c0_i32_1 = arith.constant 0 : i32
    return %c0_i32, %c0_i32_0 : i32, i32
  }
  func.func @transform_6(%arg0: i32, %arg1: i32) -> (i32, i32) {
    %c0_i32 = arith.constant 0 : i32
    %c0_i32_0 = arith.constant 0 : i32
    %c0_i32_1 = arith.constant 0 : i32
    return %c0_i32, %c0_i32_0 : i32, i32
  }
  func.func @transform_7(%arg0: i32, %arg1: i32) -> (i32, i32, i32) {
    %c0_i32 = arith.constant 0 : i32
    %c0_i32_0 = arith.constant 0 : i32
    %c0_i32_1 = arith.constant 0 : i32
    return %arg0, %c0_i32, %c0_i32_0 : i32, i32, i32
  }
  func.func @transform_8(%arg0: i32, %arg1: i32) -> (i32, i32, i32) {
    %c0_i32 = arith.constant 0 : i32
    %c0_i32_0 = arith.constant 0 : i32
    %c0_i32_1 = arith.constant 0 : i32
    return %arg0, %c0_i32, %c0_i32_0 : i32, i32, i32
  }
  func.func @transform_9(%arg0: i32, %arg1: i32) -> (i32, i32, i32) {
    %c0_i32 = arith.constant 0 : i32
    %c0_i32_0 = arith.constant 0 : i32
    return %arg0, %c0_i32, %arg1 : i32, i32, i32
  }
  func.func @transform_10(%arg0: i32, %arg1: i32) -> (i32, i32, i32) {
    %c0_i32 = arith.constant 0 : i32
    %c0_i32_0 = arith.constant 0 : i32
    return %arg0, %c0_i32, %arg1 : i32, i32, i32
  }
}

</mosaic_0001>

<llo_original>
// kernel: tpu_custom_call.1
$region0: #{tpu_custom_call.1}
  #allocation0 [shape = 'u32[]', space=smem, size = 0x4, offset = 0x4, fixed_abs, tag = 'smem constant byte address 0x4 - core index']
  #allocation1 [shape = 'u32[144,128]{1,0:T(1,128)}', space=vmem, size = 0x12000, scoped, tag = 'internal scratch']
  %s0 = inlined_call_operand.vmem [shape: f32[2,8,256], index: 0, kind: input, shape index: {}]
  %s1 = inlined_call_operand.vmem [shape: f32[2,2,256], index: 1, kind: input, shape index: {}]
  %s2 = inlined_call_operand.vmem [shape: f32[32,8], index: 2, kind: input, shape index: {}]
  %s3 = inlined_call_operand.vmem [shape: f32[32,2], index: 3, kind: input, shape index: {}]
  %s4 = inlined_call_operand.vmem [shape: f32[32,1], index: 4, kind: input, shape index: {}]
  %s5 = inlined_call_operand.vmem [shape: f32[32,32], index: 5, kind: input, shape index: {}]
  %s6 = inlined_call_operand.vmem [shape: f32[32,1], index: 6, kind: input, shape index: {}]
  %s7 = inlined_call_operand.vmem [shape: f32[2,1,32], index: 7, kind: input, shape index: {}]
  %s8 = inlined_call_operand.vmem [shape: f32[2,8,1], index: 8, kind: input, shape index: {}]
  %s9 = inlined_call_operand.hbm [shape: f32[2,8,256], index: 9, kind: output, shape index: {0}]
  %s10 = inlined_call_operand.hbm [shape: f32[2,1,256], index: 10, kind: output, shape index: {1}]
  %11 = xla_tuple %s9, %s10
  %s12 = sld [smem:[#allocation0]]
  $region77: #{tpu_custom_call.1} parent=0
    _
  %s14 = ssub.s32 1, %s12
  %s15 = scalar_select 0, %s14, %s12
  $region1: #{tpu_custom_call.1} parent=0
    #allocation2 [shape = 'u8[16384]{0}', space=vmem, size = 0x4000, scoped, tag = 'output window, operand 0']
    #allocation3 [shape = 's32[2]{0}', space=sflag, size = 0x8, scoped, tag = 'scoped memory for tpu_custom_call.1']
    #allocation4 [shape = 'u8[2048]{0}', space=vmem, size = 0x800, scoped, tag = 'output window, operand 1']
    #allocation5 [shape = 's32[2]{0}', space=sflag, size = 0x8, scoped, tag = 'scoped memory for tpu_custom_call.1']
    %16 = vsyncpa [#allocation3], 0
    %s17 = scalar_lea.sflag [#allocation3], 1
    %18 = vsyncpa %s17, 0
    %19 = vsyncpa [#allocation5], 0
    %s20 = scalar_lea.sflag [#allocation5], 1
    %21 = vsyncpa %s20, 0
    loop: start=0, step=1, limit=4
    $region2: #{tpu_custom_call.1} parent=1 // loop_pre_header
      _
    $region3: #{tpu_custom_call.1} parent=1 // loop_header
      %s23 = sphi 0, %s27
      %p24 = scmp.ge.s32.totalorder %s23, 4
      %s30 = sphi 0, %s42
      %s31 = sphi 0, %s38
      %s32 = sphi 0, %s30
      %s33 = sphi 0, %s31
      %s34 = sphi 0, %s32
      %s35 = sphi 0, %s33
      %s47 = sphi 0, %s49
      %s50 = sphi 0, %s47
      %s51 = sphi 0, %s50
      %s67 = sphi 0, %s51
      %s75 = sphi 0, %s77
      %s78 = sphi 0, %s75
      %s79 = sphi 0, %s78
      %s95 = sphi 0, %s79
      %s99 = sphi 0, %s99
      %s101 = sphi 0, %s99
      %s102 = sphi 0, %s101
      %s116 = sphi 0, %s102
      %s120 = sphi 0, %s120
      %s122 = sphi 0, %s120
      %s123 = sphi 0, %s122
      %s137 = sphi 0, %s123
      %s141 = sphi 0, %s141
      %s143 = sphi 0, %s141
      %s144 = sphi 0, %s143
      %s158 = sphi 0, %s144
      %s162 = sphi 0, %s162
      %s164 = sphi 0, %s162
      %s165 = sphi 0, %s164
      %s179 = sphi 0, %s165
      %s183 = sphi 0, %s183
      %s185 = sphi 0, %s183
      %s186 = sphi 0, %s185
      %s200 = sphi 0, %s186
      %s206 = sphi 0, %s208
      %s209 = sphi 0, %s206
      %s210 = sphi 0, %s209
      %s226 = sphi 0, %s210
      %s232 = sphi 0, %s234
      %s235 = sphi 0, %s232
      %s236 = sphi 0, %s235
      %s252 = sphi 0, %s236
      %s260 = sphi 0, %s262
      %s263 = sphi 0, %s260
      %s264 = sphi 0, %s263
      %s280 = sphi 0, %s264
      %s288 = sphi 0, %s290
      %s291 = sphi 0, %s288
      %s292 = sphi 0, %s291
      %s308 = sphi 0, %s292
    $region4: #{tpu_custom_call.1} parent=1 // loop_header_branch
      %26 = sbr.rel (%p24) target = $region8
    $region5: #{tpu_custom_call.1} parent=1 // loop_body
      %s28 = ssub.s32 %s23, 1
      %s29 = ssub.s32 %s23, 2
      %s36 = sadd.s32 1, %s31
      %p37 = scmp.ge.s32.totalorder %s36, 1
      %s38 = scalar_select %p37, 0, %s36
      %s39 = sadd.s32 1, %s30
      %s40 = scalar_select %p37, %s39, %s30
      %p41 = scmp.ge.s32.totalorder %s40, 2
      %s42 = scalar_select %p41, 0, %s40
      %s43 = ssub.s32 %s30, %s42
      %s44 = ssub.s32 %s31, %s38
      %s45 = sor.u32 %s43, %s44
      %p46 = scmp.eq.s32.totalorder %s45, 0
      %s48 = sadd.s32 %s47, 1
      %s49 = scalar_select %p46, %s47, %s48
      %p52 = pneg %p46
      %p53 = scmp.eq.s32.totalorder %s23, 1
      %p54 = por %p52, %p53
      %p55 = scmp.ne.s32.totalorder %s47, %s50
      %p56 = scmp.eq.s32.totalorder %s23, 0
      %p57 = por %p55, %p56
      %p58 = scmp.ne.s32.totalorder %s47, %s50
      %p59 = scmp.eq.s32.totalorder %s28, 1
      %p60 = por %p58, %p59
      %p61 = scmp.ne.s32.totalorder %s50, %s51
      %p62 = scmp.eq.s32.totalorder %s28, 0
      %p63 = por %p61, %p62
      %p64 = scmp.ne.s32.totalorder %s50, %s51
      %p65 = scmp.eq.s32.totalorder %s29, 1
      %p66 = por %p64, %p65
      %p68 = scmp.ne.s32.totalorder %s51, %s67
      %p69 = scmp.eq.s32.totalorder %s29, 0
      %p70 = por %p68, %p69
      %s71 = ssub.s32 %s30, %s42
      %s72 = ssub.s32 %s31, %s38
      %s73 = sor.u32 %s71, %s72
      %p74 = scmp.eq.s32.totalorder %s73, 0
      %s76 = sadd.s32 %s75, 1
      %s77 = scalar_select %p74, %s75, %s76
      %p80 = pneg %p74
      %p81 = scmp.eq.s32.totalorder %s23, 1
      %p82 = por %p80, %p81
      %p83 = scmp.ne.s32.totalorder %s75, %s78
      %p84 = scmp.eq.s32.totalorder %s23, 0
      %p85 = por %p83, %p84
      %p86 = scmp.ne.s32.totalorder %s75, %s78
      %p87 = scmp.eq.s32.totalorder %s28, 1
      %p88 = por %p86, %p87
      %p89 = scmp.ne.s32.totalorder %s78, %s79
      %p90 = scmp.eq.s32.totalorder %s28, 0
      %p91 = por %p89, %p90
      %p92 = scmp.ne.s32.totalorder %s78, %s79
      %p93 = scmp.eq.s32.totalorder %s29, 1
      %p94 = por %p92, %p93
      %p96 = scmp.ne.s32.totalorder %s79, %s95
      %p97 = scmp.eq.s32.totalorder %s29, 0
      %p98 = por %p96, %p97
      %s100 = sadd.s32 %s99, 1
      %p103 = scmp.eq.s32.totalorder %s23, 1
      %p104 = scmp.ne.s32.totalorder %s99, %s101
      %p105 = scmp.eq.s32.totalorder %s23, 0
      %p106 = por %p104, %p105
      %p107 = scmp.ne.s32.totalorder %s99, %s101
      %p108 = scmp.eq.s32.totalorder %s28, 1
      %p109 = por %p107, %p108
      %p110 = scmp.ne.s32.totalorder %s101, %s102
      %p111 = scmp.eq.s32.totalorder %s28, 0
      %p112 = por %p110, %p111
      %p113 = scmp.ne.s32.totalorder %s101, %s102
      %p114 = scmp.eq.s32.totalorder %s29, 1
      %p115 = por %p113, %p114
      %p117 = scmp.ne.s32.totalorder %s102, %s116
      %p118 = scmp.eq.s32.totalorder %s29, 0
      %p119 = por %p117, %p118
      %s121 = sadd.s32 %s120, 1
      %p124 = scmp.eq.s32.totalorder %s23, 1
      %p125 = scmp.ne.s32.totalorder %s120, %s122
      %p126 = scmp.eq.s32.totalorder %s23, 0
      %p127 = por %p125, %p126
      %p128 = scmp.ne.s32.totalorder %s120, %s122
      %p129 = scmp.eq.s32.totalorder %s28, 1
      %p130 = por %p128, %p129
      %p131 = scmp.ne.s32.totalorder %s122, %s123
      %p132 = scmp.eq.s32.totalorder %s28, 0
      %p133 = por %p131, %p132
      %p134 = scmp.ne.s32.totalorder %s122, %s123
      %p135 = scmp.eq.s32.totalorder %s29, 1
      %p136 = por %p134, %p135
      %p138 = scmp.ne.s32.totalorder %s123, %s137
      %p139 = scmp.eq.s32.totalorder %s29, 0
      %p140 = por %p138, %p139
      %s142 = sadd.s32 %s141, 1
      %p145 = scmp.eq.s32.totalorder %s23, 1
      %p146 = scmp.ne.s32.totalorder %s141, %s143
      %p147 = scmp.eq.s32.totalorder %s23, 0
      %p148 = por %p146, %p147
      %p149 = scmp.ne.s32.totalorder %s141, %s143
      %p150 = scmp.eq.s32.totalorder %s28, 1
      %p151 = por %p149, %p150
      %p152 = scmp.ne.s32.totalorder %s143, %s144
      %p153 = scmp.eq.s32.totalorder %s28, 0
      %p154 = por %p152, %p153
      %p155 = scmp.ne.s32.totalorder %s143, %s144
      %p156 = scmp.eq.s32.totalorder %s29, 1
      %p157 = por %p155, %p156
      %p159 = scmp.ne.s32.totalorder %s144, %s158
      %p160 = scmp.eq.s32.totalorder %s29, 0
      %p161 = por %p159, %p160
      %s163 = sadd.s32 %s162, 1
      %p166 = scmp.eq.s32.totalorder %s23, 1
      %p167 = scmp.ne.s32.totalorder %s162, %s164
      %p168 = scmp.eq.s32.totalorder %s23, 0
      %p169 = por %p167, %p168
      %p170 = scmp.ne.s32.totalorder %s162, %s164
      %p171 = scmp.eq.s32.totalorder %s28, 1
      %p172 = por %p170, %p171
      %p173 = scmp.ne.s32.totalorder %s164, %s165
      %p174 = scmp.eq.s32.totalorder %s28, 0
      %p175 = por %p173, %p174
      %p176 = scmp.ne.s32.totalorder %s164, %s165
      %p177 = scmp.eq.s32.totalorder %s29, 1
      %p178 = por %p176, %p177
      %p180 = scmp.ne.s32.totalorder %s165, %s179
      %p181 = scmp.eq.s32.totalorder %s29, 0
      %p182 = por %p180, %p181
      %s184 = sadd.s32 %s183, 1
      %p187 = scmp.eq.s32.totalorder %s23, 1
      %p188 = scmp.ne.s32.totalorder %s183, %s185
      %p189 = scmp.eq.s32.totalorder %s23, 0
      %p190 = por %p188, %p189
      %p191 = scmp.ne.s32.totalorder %s183, %s185
      %p192 = scmp.eq.s32.totalorder %s28, 1
      %p193 = por %p191, %p192
      %p194 = scmp.ne.s32.totalorder %s185, %s186
      %p195 = scmp.eq.s32.totalorder %s28, 0
      %p196 = por %p194, %p195
      %p197 = scmp.ne.s32.totalorder %s185, %s186
      %p198 = scmp.eq.s32.totalorder %s29, 1
      %p199 = por %p197, %p198
      %p201 = scmp.ne.s32.totalorder %s186, %s200
      %p202 = scmp.eq.s32.totalorder %s29, 0
      %p203 = por %p201, %p202
      %s204 = ssub.s32 %s30, %s42
      %p205 = scmp.eq.s32.totalorder %s204, 0
      %s207 = sadd.s32 %s206, 1
      %s208 = scalar_select %p205, %s206, %s207
      %p211 = pneg %p205
      %p212 = scmp.eq.s32.totalorder %s23, 1
      %p213 = por %p211, %p212
      %p214 = scmp.ne.s32.totalorder %s206, %s209
      %p215 = scmp.eq.s32.totalorder %s23, 0
      %p216 = por %p214, %p215
      %p217 = scmp.ne.s32.totalorder %s206, %s209
      %p218 = scmp.eq.s32.totalorder %s28, 1
      %p219 = por %p217, %p218
      %p220 = scmp.ne.s32.totalorder %s209, %s210
      %p221 = scmp.eq.s32.totalorder %s28, 0
      %p222 = por %p220, %p221
      %p223 = scmp.ne.s32.totalorder %s209, %s210
      %p224 = scmp.eq.s32.totalorder %s29, 1
      %p225 = por %p223, %p224
      %p227 = scmp.ne.s32.totalorder %s210, %s226
      %p228 = scmp.eq.s32.totalorder %s29, 0
      %p229 = por %p227, %p228
      %s230 = ssub.s32 %s30, %s42
      %p231 = scmp.eq.s32.totalorder %s230, 0
      %s233 = sadd.s32 %s232, 1
      %s234 = scalar_select %p231, %s232, %s233
      %p237 = pneg %p231
      %p238 = scmp.eq.s32.totalorder %s23, 1
      %p239 = por %p237, %p238
      %p240 = scmp.ne.s32.totalorder %s232, %s235
      %p241 = scmp.eq.s32.totalorder %s23, 0
      %p242 = por %p240, %p241
      %p243 = scmp.ne.s32.totalorder %s232, %s235
      %p244 = scmp.eq.s32.totalorder %s28, 1
      %p245 = por %p243, %p244
      %p246 = scmp.ne.s32.totalorder %s235, %s236
      %p247 = scmp.eq.s32.totalorder %s28, 0
      %p248 = por %p246, %p247
      %p249 = scmp.ne.s32.totalorder %s235, %s236
      %p250 = scmp.eq.s32.totalorder %s29, 1
      %p251 = por %p249, %p250
      %p253 = scmp.ne.s32.totalorder %s236, %s252
      %p254 = scmp.eq.s32.totalorder %s29, 0
      %p255 = por %p253, %p254
      %s256 = ssub.s32 %s30, %s42
      %s257 = ssub.s32 %s31, %s38
      %s258 = sor.u32 %s256, %s257
      %p259 = scmp.eq.s32.totalorder %s258, 0
      %s261 = sadd.s32 %s260, 1
      %s262 = scalar_select %p259, %s260, %s261
      %p265 = pneg %p259
      %p266 = scmp.eq.s32.totalorder %s23, 1
      %p267 = por %p265, %p266
      %p268 = scmp.ne.s32.totalorder %s260, %s263
      %p269 = scmp.eq.s32.totalorder %s23, 0
      %p270 = por %p268, %p269
      %p271 = scmp.ne.s32.totalorder %s260, %s263
      %p272 = scmp.eq.s32.totalorder %s28, 1
      %p273 = por %p271, %p272
      %p274 = scmp.ne.s32.totalorder %s263, %s264
      %p275 = scmp.eq.s32.totalorder %s28, 0
      %p276 = por %p274, %p275
      %p277 = scmp.ne.s32.totalorder %s263, %s264
      %p278 = scmp.eq.s32.totalorder %s29, 1
      %p279 = por %p277, %p278
      %p281 = scmp.ne.s32.totalorder %s264, %s280
      %p282 = scmp.eq.s32.totalorder %s29, 0
      %p283 = por %p281, %p282
      %s284 = ssub.s32 %s30, %s42
      %s285 = ssub.s32 %s31, %s38
      %s286 = sor.u32 %s284, %s285
      %p287 = scmp.eq.s32.totalorder %s286, 0
      %s289 = sadd.s32 %s288, 1
      %s290 = scalar_select %p287, %s288, %s289
      %p293 = pneg %p287
      %p294 = scmp.eq.s32.totalorder %s23, 1
      %p295 = por %p293, %p294
      %p296 = scmp.ne.s32.totalorder %s288, %s291
      %p297 = scmp.eq.s32.totalorder %s23, 0
      %p298 = por %p296, %p297
      %p299 = scmp.ne.s32.totalorder %s288, %s291
      %p300 = scmp.eq.s32.totalorder %s28, 1
      %p301 = por %p299, %p300
      %p302 = scmp.ne.s32.totalorder %s291, %s292
      %p303 = scmp.eq.s32.totalorder %s28, 0
      %p304 = por %p302, %p303
      %p305 = scmp.ne.s32.totalorder %s291, %s292
      %p306 = scmp.eq.s32.totalorder %s29, 1
      %p307 = por %p305, %p306
      %p309 = scmp.ne.s32.totalorder %s292, %s308
      %p310 = scmp.eq.s32.totalorder %s29, 0
      %p311 = por %p309, %p310
      %p312 = scmp.le.s32.totalorder 1, %s23
      %p313 = scmp.lt.s32.totalorder %s23, 3
      %p314 = pnand %p312, %p313
      %p315 = pneg %p314
      // Predicated region
      $region9: #{tpu_custom_call.1} parent=5 // pred_check
        _
      $region10: #{tpu_custom_call.1} parent=5 // pred_check_branch
        %317 = sbr.rel (%p314) target = $region12
      $region11: #{tpu_custom_call.1} parent=5 // pred_region
        %s318 = ssub.s32 %s23, 1
        // Predicated region
        $region13: #{tpu_custom_call.1} parent=11 // pred_check
          %p319 = pneg %p112
        $region14: #{tpu_custom_call.1} parent=11 // pred_check_branch
          %321 = sbr.rel (%p319) target = $region16
        $region15: #{tpu_custom_call.1} parent=11 // pred_region
          _
        $region16: #{tpu_custom_call.1} parent=11 // pred_fallthru
          _
        // Predicated region
        $region17: #{tpu_custom_call.1} parent=11 // pred_check
          %p322 = pneg %p133
        $region18: #{tpu_custom_call.1} parent=11 // pred_check_branch
          %324 = sbr.rel (%p322) target = $region20
        $region19: #{tpu_custom_call.1} parent=11 // pred_region
          _
        $region20: #{tpu_custom_call.1} parent=11 // pred_fallthru
          _
        // Predicated region
        $region21: #{tpu_custom_call.1} parent=11 // pred_check
          %p325 = pneg %p154
        $region22: #{tpu_custom_call.1} parent=11 // pred_check_branch
          %327 = sbr.rel (%p325) target = $region24
        $region23: #{tpu_custom_call.1} parent=11 // pred_region
          _
        $region24: #{tpu_custom_call.1} parent=11 // pred_fallthru
          _
        // Predicated region
        $region25: #{tpu_custom_call.1} parent=11 // pred_check
          %p328 = pneg %p175
        $region26: #{tpu_custom_call.1} parent=11 // pred_check_branch
          %330 = sbr.rel (%p328) target = $region28
        $region27: #{tpu_custom_call.1} parent=11 // pred_region
          _
        $region28: #{tpu_custom_call.1} parent=11 // pred_fallthru
          _
        // Predicated region
        $region29: #{tpu_custom_call.1} parent=11 // pred_check
          %p331 = pneg %p196
        $region30: #{tpu_custom_call.1} parent=11 // pred_check_branch
          %333 = sbr.rel (%p331) target = $region32
        $region31: #{tpu_custom_call.1} parent=11 // pred_region
          _
        $region32: #{tpu_custom_call.1} parent=11 // pred_fallthru
          _
      $region12: #{tpu_custom_call.1} parent=5 // pred_fallthru
        _
      %p334 = scmp.lt.s32.totalorder %s23, 2
      // Predicated region
      $region33: #{tpu_custom_call.1} parent=5 // pred_check
        %p335 = pneg %p334
      $region34: #{tpu_custom_call.1} parent=5 // pred_check_branch
        %337 = sbr.rel (%p335) target = $region36
      $region35: #{tpu_custom_call.1} parent=5 // pred_region
        // Predicated region
        $region37: #{tpu_custom_call.1} parent=35 // pred_check
          %p338 = pneg %p57
        $region38: #{tpu_custom_call.1} parent=35 // pred_check_branch
          %340 = sbr.rel (%p338) target = $region40
        $region39: #{tpu_custom_call.1} parent=35 // pred_region
          %s341 = smul.u32 2, %s31
          %p342 = scmp.lt.s32.totalorder %s30, 1
          %s343 = scalar_select %p342, %s30, 1
          %p344 = scmp.lt.s32.totalorder %s341, 1
          %s345 = scalar_select %p344, %s341, 1
          %s346 = smul.addr %s343, 2
          %s347 = sadd.s32 %s345, %s346
          %s348 = smul.addr %s347, 8
          %s349 = scalar_lea.vmem %s0, %s348
          %s350 = smul.u32 2, %s31
        $region40: #{tpu_custom_call.1} parent=35 // pred_fallthru
          _
        // Predicated region
        $region41: #{tpu_custom_call.1} parent=35 // pred_check
          %p351 = pneg %p85
        $region42: #{tpu_custom_call.1} parent=35 // pred_check_branch
          %353 = sbr.rel (%p351) target = $region44
        $region43: #{tpu_custom_call.1} parent=35 // pred_region
          %s354 = smul.u32 2, %s31
          %p355 = scmp.lt.s32.totalorder %s30, 1
          %s356 = scalar_select %p355, %s30, 1
          %p357 = scmp.lt.s32.totalorder %s354, 1
          %s358 = scalar_select %p357, %s354, 1
          %s359 = smul.addr %s356, 2
          %s360 = sadd.s32 %s358, %s359
          %s361 = smul.addr %s360, 2
          %s362 = scalar_lea.vmem %s1, %s361
          %s363 = smul.u32 2, %s31
        $region44: #{tpu_custom_call.1} parent=35 // pred_fallthru
          _
        // Predicated region
        $region45: #{tpu_custom_call.1} parent=35 // pred_check
          %p364 = pneg %p216
        $region46: #{tpu_custom_call.1} parent=35 // pred_check_branch
          %366 = sbr.rel (%p364) target = $region48
        $region47: #{tpu_custom_call.1} parent=35 // pred_region
          %p367 = scmp.lt.s32.totalorder %s30, 1
          %s368 = scalar_select %p367, %s30, 1
          %s369 = scalar_lea.vmem %s7, %s368
        $region48: #{tpu_custom_call.1} parent=35 // pred_fallthru
          _
        // Predicated region
        $region49: #{tpu_custom_call.1} parent=35 // pred_check
          %p370 = pneg %p242
        $region50: #{tpu_custom_call.1} parent=35 // pred_check_branch
          %372 = sbr.rel (%p370) target = $region52
        $region51: #{tpu_custom_call.1} parent=35 // pred_region
          %p373 = scmp.lt.s32.totalorder %s30, 1
          %s374 = scalar_select %p373, %s30, 1
          %s375 = smul.addr %s374, 8
          %s376 = scalar_lea.vmem %s8, %s375
        $region52: #{tpu_custom_call.1} parent=35 // pred_fallthru
          _
      $region36: #{tpu_custom_call.1} parent=5 // pred_fallthru
        _
      %p377 = scmp.le.s32.totalorder 1, %s23
      %p378 = scmp.lt.s32.totalorder %s23, 3
      %p379 = pnand %p377, %p378
      %p380 = pneg %p379
      // Predicated region
      $region53: #{tpu_custom_call.1} parent=5 // pred_check
        _
      $region54: #{tpu_custom_call.1} parent=5 // pred_check_branch
        %382 = sbr.rel (%p379) target = $region56
      $region55: #{tpu_custom_call.1} parent=5 // pred_region
        %s383 = ssub.s32 %s23, 1
        %s384 = smul.u32 2, %s33
        %p385 = scmp.lt.s32.totalorder %s32, 1
        %s386 = scalar_select %p385, %s32, 1
        %p387 = scmp.lt.s32.totalorder %s384, 1
        %s388 = scalar_select %p387, %s384, 1
        %s389 = smul.addr %s386, 2
        %s390 = sadd.s32 %s388, %s389
        %s391 = smul.addr %s390, 8
        %s392 = scalar_lea.vmem %s0, %s391
        %p393 = pneg %p63
        %p394 = pneg %p60
        %s395 = smul.u32 2, %s33
        %p396 = scmp.lt.s32.totalorder %s32, 1
        %s397 = scalar_select %p396, %s32, 1
        %p398 = scmp.lt.s32.totalorder %s395, 1
        %s399 = scalar_select %p398, %s395, 1
        %s400 = smul.addr %s397, 2
        %s401 = sadd.s32 %s399, %s400
        %s402 = smul.addr %s401, 2
        %s403 = scalar_lea.vmem %s1, %s402
        %p404 = pneg %p91
        %p405 = pneg %p88
        %p406 = pneg %p112
        %p407 = pneg %p109
        %p408 = pneg %p133
        %p409 = pneg %p130
        %p410 = pneg %p154
        %p411 = pneg %p151
        %p412 = pneg %p175
        %p413 = pneg %p172
        %p414 = pneg %p196
        %p415 = pneg %p193
        %p416 = scmp.lt.s32.totalorder %s32, 1
        %s417 = scalar_select %p416, %s32, 1
        %s418 = scalar_lea.vmem %s7, %s417
        %p419 = pneg %p222
        %p420 = pneg %p219
        %p421 = scmp.lt.s32.totalorder %s32, 1
        %s422 = scalar_select %p421, %s32, 1
        %s423 = smul.addr %s422, 8
        %s424 = scalar_lea.vmem %s8, %s423
        %p425 = pneg %p248
        %p426 = pneg %p245
        %p427 = pneg %p276
        %p428 = pneg %p273
        %s429 = sand.u32 %s263, 1
        %s430 = scalar_lea.sflag [#allocation3], %s429
        %s431 = sand.u32 %s263, 1
        %s432 = smul.addr %s431, 16
        %s433 = scalar_lea.vmem [#allocation2], %s432
        %p434 = pneg %p304
        %p435 = pneg %p301
        %s436 = sand.u32 %s291, 1
        %s437 = scalar_lea.sflag [#allocation5], %s436
        %s438 = sand.u32 %s291, 1
        %s439 = smul.addr %s438, 2
        %s440 = scalar_lea.vmem [#allocation4], %s439
        %s441 = smul.u32 2, %s33
        %p442 = scmp.lt.s32.totalorder %s32, 1
        %s443 = scalar_select %p442, %s32, 1
        %p444 = scmp.lt.s32.totalorder %s441, 1
        %s445 = scalar_select %p444, %s441, 1
        %s446 = smul.addr %s443, 2
        %s447 = sadd.s32 %s445, %s446
        %s448 = smul.addr %s447, 8
        %s449 = scalar_lea.vmem %s0, %s448
        %s450 = smul.u32 2, %s33
        %s451 = smul.u32 2, %s33
        %p452 = scmp.lt.s32.totalorder %s32, 1
        %s453 = scalar_select %p452, %s32, 1
        %p454 = scmp.lt.s32.totalorder %s451, 1
        %s455 = scalar_select %p454, %s451, 1
        %s456 = smul.addr %s453, 2
        %s457 = sadd.s32 %s455, %s456
        %s458 = smul.addr %s457, 2
        %s459 = scalar_lea.vmem %s1, %s458
        %s460 = smul.u32 2, %s33
        %p461 = scmp.lt.s32.totalorder %s32, 1
        %s462 = scalar_select %p461, %s32, 1
        %s463 = scalar_lea.vmem %s7, %s462
        %p464 = scmp.lt.s32.totalorder %s32, 1
        %s465 = scalar_select %p464, %s32, 1
        %s466 = smul.addr %s465, 8
        %s467 = scalar_lea.vmem %s8, %s466
        %s468 = smul.u32 2, %s33
        %s469 = smul.u32 2, %s33
        %v470 = vld [vmem:[%s449] sm:$0xff]
        %v471 = vld [vmem:[%s449 + $0x8] sm:$0xff]
        %v472 = vld [vmem:[%s459] sm:$0xf]
        %v473 = vld [vmem:[%s2] sm:$0xff]
        %v474 = vld [vmem:[%s2 + $0x8] sm:$0xff]
        %v475 = vld [vmem:[%s2 + $0x10] sm:$0xff]
        %v476 = vld [vmem:[%s2 + $0x18] sm:$0xff]
        %v477 = vld [vmem:[%s3] sm:$0xff]
        %v478 = vld [vmem:[%s3 + $0x8] sm:$0xff]
        %v479 = vld [vmem:[%s3 + $0x10] sm:$0xff]
        %v480 = vld [vmem:[%s3 + $0x18] sm:$0xff]
        %v483 = vunpack.c.l.s4 1983009808
        %v484 = vunpack.c.0.s8 %v483
        %v485 = vlaneseq
        %v486 = vshrl.u32 %v485, 7
        %v487 = vsub.s32 %v484, %v486
        %v488 = vrot.slane %v472, %v487
        %v489 = vcombine.high %v488, %v488
        %vm490 = vcmask 15360
        %v492 = vsel %vm490, %v477, 0
        %v495 = vsel %vm490, %v478, 0
        %v498 = vsel %vm490, %v479, 0
        %v501 = vsel %vm490, %v480, 0
        %vm503 = vcmask 1041408
        %v504 = vsel %vm503, %v488, 0
        %v506 = vsel %vm503, %v489, 0
        %508 = vmatprep.subr.mxu0 0.0
        %509 = vmatpush1.msra.mxu0 0.0
        %510 = vmatprep.subr.mxu0 0.0
        %511 = vmatpush1.msra.mxu0 0.0
        %512 = vmatprep.subr.mxu0 0.0
        %513 = vmatpush1.msra.mxu0 0.0
        %514 = vmatprep.subr.mxu0 0.0
        %515 = vmatpush1.msra.mxu0 0.0
        %516 = vmatprep.subr.mxu0 0.0
        %517 = vmatpush1.msra.mxu0 0.0
        %518 = vmatprep.subr.mxu0 0.0
        %519 = vmatpush1.msra.mxu0 0.0
        %520 = vmatprep.subr.mxu0 0.0
        %521 = vmatpush1.msra.mxu0 0.0
        %522 = vmatprep.subr.mxu0 0.0
        %523 = vmatpush1.msra.mxu0 0.0
        %524 = vmatprep.subr.mxu0 0.0
        %525 = vmatpush1.msra.mxu0 0.0
        %526 = vmatprep.subr.mxu0 0.0
        %527 = vmatpush1.msra.mxu0 0.0
        %528 = vmatprep.subr.mxu0 0.0
        %529 = vmatpush1.msra.mxu0 0.0
        %530 = vmatprep.subr.mxu0 0.0
        %531 = vmatpush1.msra.mxu0 0.0
        %532 = vmatprep.subr.mxu0 0.0
        %533 = vmatpush1.msra.mxu0 0.0
        %534 = vmatprep.subr.mxu0 0.0
        %535 = vmatpush1.msra.mxu0 0.0
        %536 = vmatprep.subr.mxu0 0.0
        %537 = vmatpush1.msra.mxu0 0.0
        %538 = vmatprep.subr.mxu0 %v506
        %539 = vmatpush1.msra.mxu0 %v504
        %540 = vmatprep.subr.mxu0 0.0
        %541 = vmatpush2.msra.mxu0 0.0
        %542 = vmatprep.subr.mxu0 0.0
        %543 = vmatpush2.msra.mxu0 0.0
        %544 = vmatprep.subr.mxu0 0.0
        %545 = vmatpush2.msra.mxu0 0.0
        %546 = vmatprep.subr.mxu0 0.0
        %547 = vmatpush2.msra.mxu0 0.0
        %548 = vmatprep.subr.mxu0 0.0
        %549 = vmatpush2.msra.mxu0 0.0
        %550 = vmatprep.subr.mxu0 0.0
        %551 = vmatpush2.msra.mxu0 0.0
        %552 = vmatprep.subr.mxu0 0.0
        %553 = vmatpush2.msra.mxu0 0.0
        %554 = vmatprep.subr.mxu0 0.0
        %555 = vmatpush2.msra.mxu0 0.0
        %556 = vmatprep.subr.mxu0 0.0
        %557 = vmatpush2.msra.mxu0 0.0
        %558 = vmatprep.subr.mxu0 0.0
        %559 = vmatpush2.msra.mxu0 0.0
        %560 = vmatprep.subr.mxu0 0.0
        %561 = vmatpush2.msra.mxu0 0.0
        %562 = vmatprep.subr.mxu0 0.0
        %563 = vmatpush2.msra.mxu0 0.0
        %564 = vmatprep.subr.mxu0 0.0
        %565 = vmatpush2.msra.mxu0 0.0
        %566 = vmatprep.subr.mxu0 0.0
        %567 = vmatpush2.msra.mxu0 0.0
        %568 = vmatprep.subr.mxu0 0.0
        %569 = vmatpush2.msra.mxu0 0.0
        %570 = vmatprep.subr.mxu0 0.0
        %571 = vmatpush2.msra.mxu0 0.0
        %572 = vmatprep.mubr.f32.mxu0 0.0
        %573 = vmatmul.mubr.f32.gmra.mxu0 %v492
        %v574 = vpop.f32.mrf.mxu0
        %v575 = vadd.f32 0.0, %v574
        %v576 = vpop.f32.mrf.mxu0
        %v577 = vadd.f32 0.0, %v576
        %578 = vmatprep.mubr.f32.mxu0 0.0
        %579 = vmatmul.mubr.f32.gmra.mxu0 %v495
        %v580 = vpop.f32.mrf.mxu0
        %v581 = vadd.f32 0.0, %v580
        %v582 = vpop.f32.mrf.mxu0
        %v583 = vadd.f32 0.0, %v582
        %584 = vmatprep.mubr.f32.mxu0 0.0
        %585 = vmatmul.mubr.f32.gmra.mxu0 %v498
        %v586 = vpop.f32.mrf.mxu0
        %v587 = vadd.f32 0.0, %v586
        %v588 = vpop.f32.mrf.mxu0
        %v589 = vadd.f32 0.0, %v588
        %590 = vmatprep.mubr.f32.mxu0 0.0
        %591 = vmatmul.mubr.f32.gmra.mxu0 %v501
        %v592 = vpop.f32.mrf.mxu0
        %v593 = vadd.f32 0.0, %v592
        %v594 = vpop.f32.mrf.mxu0
        %v595 = vadd.f32 0.0, %v594
        %596 = vdwg.mxu0
        %vm597 = vcmask 64512
        %v599 = vsel %vm597, %v473, 0
        %v602 = vsel %vm597, %v474, 0
        %v605 = vsel %vm597, %v475, 0
        %v608 = vsel %vm597, %v476, 0
        %610 = vmatprep.subr.mxu0 0.0
        %611 = vmatpush1.msra.mxu0 0.0
        %612 = vmatprep.subr.mxu0 0.0
        %613 = vmatpush1.msra.mxu0 0.0
        %614 = vmatprep.subr.mxu0 0.0
        %615 = vmatpush1.msra.mxu0 0.0
        %616 = vmatprep.subr.mxu0 0.0
        %617 = vmatpush1.msra.mxu0 0.0
        %618 = vmatprep.subr.mxu0 0.0
        %619 = vmatpush1.msra.mxu0 0.0
        %620 = vmatprep.subr.mxu0 0.0
        %621 = vmatpush1.msra.mxu0 0.0
        %622 = vmatprep.subr.mxu0 0.0
        %623 = vmatpush1.msra.mxu0 0.0
        %624 = vmatprep.subr.mxu0 0.0
        %625 = vmatpush1.msra.mxu0 0.0
        %626 = vmatprep.subr.mxu0 0.0
        %627 = vmatpush1.msra.mxu0 0.0
        %628 = vmatprep.subr.mxu0 0.0
        %629 = vmatpush1.msra.mxu0 0.0
        %630 = vmatprep.subr.mxu0 0.0
        %631 = vmatpush1.msra.mxu0 0.0
        %632 = vmatprep.subr.mxu0 0.0
        %633 = vmatpush1.msra.mxu0 0.0
        %634 = vmatprep.subr.mxu0 0.0
        %635 = vmatpush1.msra.mxu0 0.0
        %636 = vmatprep.subr.mxu0 0.0
        %637 = vmatpush1.msra.mxu0 0.0
        %638 = vmatprep.subr.mxu0 0.0
        %639 = vmatpush1.msra.mxu0 0.0
        %640 = vmatprep.subr.mxu0 %v471
        %641 = vmatpush1.msra.mxu0 %v470
        %642 = vmatprep.subr.mxu0 0.0
        %643 = vmatpush2.msra.mxu0 0.0
        %644 = vmatprep.subr.mxu0 0.0
        %645 = vmatpush2.msra.mxu0 0.0
        %646 = vmatprep.subr.mxu0 0.0
        %647 = vmatpush2.msra.mxu0 0.0
        %648 = vmatprep.subr.mxu0 0.0
        %649 = vmatpush2.msra.mxu0 0.0
        %650 = vmatprep.subr.mxu0 0.0
        %651 = vmatpush2.msra.mxu0 0.0
        %652 = vmatprep.subr.mxu0 0.0
        %653 = vmatpush2.msra.mxu0 0.0
        %654 = vmatprep.subr.mxu0 0.0
        %655 = vmatpush2.msra.mxu0 0.0
        %656 = vmatprep.subr.mxu0 0.0
        %657 = vmatpush2.msra.mxu0 0.0
        %658 = vmatprep.subr.mxu0 0.0
        %659 = vmatpush2.msra.mxu0 0.0
        %660 = vmatprep.subr.mxu0 0.0
        %661 = vmatpush2.msra.mxu0 0.0
        %662 = vmatprep.subr.mxu0 0.0
        %663 = vmatpush2.msra.mxu0 0.0
        %664 = vmatprep.subr.mxu0 0.0
        %665 = vmatpush2.msra.mxu0 0.0
        %666 = vmatprep.subr.mxu0 0.0
        %667 = vmatpush2.msra.mxu0 0.0
        %668 = vmatprep.subr.mxu0 0.0
        %669 = vmatpush2.msra.mxu0 0.0
        %670 = vmatprep.subr.mxu0 0.0
        %671 = vmatpush2.msra.mxu0 0.0
        %672 = vmatprep.subr.mxu0 0.0
        %673 = vmatpush2.msra.mxu0 0.0
        %674 = vmatprep.mubr.f32.mxu0 0.0
        %675 = vmatmul.mubr.f32.gmra.mxu0 %v599
        %v676 = vpop.f32.mrf.mxu0
        %v677 = vadd.f32 %v575, %v676
        %v678 = vpop.f32.mrf.mxu0
        %v679 = vadd.f32 %v577, %v678
        %680 = vmatprep.mubr.f32.mxu0 0.0
        %681 = vmatmul.mubr.f32.gmra.mxu0 %v602
        %v682 = vpop.f32.mrf.mxu0
        %v683 = vadd.f32 %v581, %v682
        %v684 = vpop.f32.mrf.mxu0
        %v685 = vadd.f32 %v583, %v684
        %686 = vmatprep.mubr.f32.mxu0 0.0
        %687 = vmatmul.mubr.f32.gmra.mxu0 %v605
        %v688 = vpop.f32.mrf.mxu0
        %v689 = vadd.f32 %v587, %v688
        %v690 = vpop.f32.mrf.mxu0
        %v691 = vadd.f32 %v589, %v690
        %692 = vmatprep.mubr.f32.mxu0 0.0
        %693 = vmatmul.mubr.f32.gmra.mxu0 %v608
        %v694 = vpop.f32.mrf.mxu0
        %v695 = vadd.f32 %v593, %v694
        %v696 = vpop.f32.mrf.mxu0
        %v697 = vadd.f32 %v595, %v696
        %698 = vdwg.mxu0
        %v699 = vld [vmem:[%s4] sm:$0xff]
        %v700 = vld [vmem:[%s4 + $0x8] sm:$0xff]
        %v701 = vld [vmem:[%s4 + $0x10] sm:$0xff]
        %v702 = vld [vmem:[%s4 + $0x18] sm:$0xff]
        %704 = vset.pattern.permute.xlu0 0
        %705 = vperm.xlu0 %704, %v699
        %v706 = vpop.permute.xlu0 %705
        %709 = vset.pattern.permute.xlu0 0
        %710 = vperm.xlu0 %709, %v700
        %v711 = vpop.permute.xlu0 %710
        %714 = vset.pattern.permute.xlu0 0
        %715 = vperm.xlu0 %714, %v701
        %v716 = vpop.permute.xlu0 %715
        %719 = vset.pattern.permute.xlu0 0
        %720 = vperm.xlu0 %719, %v702
        %v721 = vpop.permute.xlu0 %720
        %v723 = vadd.f32 %v677, %v706
        %v724 = vadd.f32 %v679, %v706
        %v725 = vadd.f32 %v683, %v711
        %v726 = vadd.f32 %v685, %v711
        %v727 = vadd.f32 %v689, %v716
        %v728 = vadd.f32 %v691, %v716
        %v729 = vadd.f32 %v695, %v721
        %v730 = vadd.f32 %v697, %v721
        %v731 = vmax.f32 %v723, 0.0
        %v732 = vmax.f32 %v724, 0.0
        %v733 = vmax.f32 %v725, 0.0
        %v734 = vmax.f32 %v726, 0.0
        %v735 = vmax.f32 %v727, 0.0
        %v736 = vmax.f32 %v728, 0.0
        %v737 = vmax.f32 %v729, 0.0
        %v738 = vmax.f32 %v730, 0.0
        %v739 = vld [vmem:[%s5] sm:$0xff]
        %v740 = vld [vmem:[%s5 + $0x8] sm:$0xff]
        %v741 = vld [vmem:[%s5 + $0x10] sm:$0xff]
        %v742 = vld [vmem:[%s5 + $0x18] sm:$0xff]
        %v743 = vld [vmem:[%s6] sm:$0xff]
        %v744 = vld [vmem:[%s6 + $0x8] sm:$0xff]
        %v745 = vld [vmem:[%s6 + $0x10] sm:$0xff]
        %v746 = vld [vmem:[%s6 + $0x18] sm:$0xff]
        %748 = vset.pattern.permute.xlu0 0
        %749 = vperm.xlu0 %748, %v743
        %v750 = vpop.permute.xlu0 %749
        %753 = vset.pattern.permute.xlu0 0
        %754 = vperm.xlu0 %753, %v744
        %v755 = vpop.permute.xlu0 %754
        %758 = vset.pattern.permute.xlu0 0
        %759 = vperm.xlu0 %758, %v745
        %v760 = vpop.permute.xlu0 %759
        %763 = vset.pattern.permute.xlu0 0
        %764 = vperm.xlu0 %763, %v746
        %v765 = vpop.permute.xlu0 %764
        %vm767 = vcmask 261120
        %v769 = vsel %vm767, %v739, 0
        %v772 = vsel %vm767, %v740, 0
        %v775 = vsel %vm767, %v741, 0
        %v778 = vsel %vm767, %v742, 0
        %780 = vmatprep.subr.mxu0 0.0
        %781 = vmatpush1.msra.mxu0 0.0
        %782 = vmatprep.subr.mxu0 0.0
        %783 = vmatpush1.msra.mxu0 0.0
        %784 = vmatprep.subr.mxu0 0.0
        %785 = vmatpush1.msra.mxu0 0.0
        %786 = vmatprep.subr.mxu0 0.0
        %787 = vmatpush1.msra.mxu0 0.0
        %788 = vmatprep.subr.mxu0 0.0
        %789 = vmatpush1.msra.mxu0 0.0
        %790 = vmatprep.subr.mxu0 0.0
        %791 = vmatpush1.msra.mxu0 0.0
        %792 = vmatprep.subr.mxu0 0.0
        %793 = vmatpush1.msra.mxu0 0.0
        %794 = vmatprep.subr.mxu0 0.0
        %795 = vmatpush1.msra.mxu0 0.0
        %796 = vmatprep.subr.mxu0 0.0
        %797 = vmatpush1.msra.mxu0 0.0
        %798 = vmatprep.subr.mxu0 0.0
        %799 = vmatpush1.msra.mxu0 0.0
        %800 = vmatprep.subr.mxu0 0.0
        %801 = vmatpush1.msra.mxu0 0.0
        %802 = vmatprep.subr.mxu0 0.0
        %803 = vmatpush1.msra.mxu0 0.0
        %804 = vmatprep.subr.mxu0 %v738
        %805 = vmatpush1.msra.mxu0 %v737
        %806 = vmatprep.subr.mxu0 %v736
        %807 = vmatpush1.msra.mxu0 %v735
        %808 = vmatprep.subr.mxu0 %v734
        %809 = vmatpush1.msra.mxu0 %v733
        %810 = vmatprep.subr.mxu0 %v732
        %811 = vmatpush1.msra.mxu0 %v731
        %812 = vmatprep.subr.mxu0 0.0
        %813 = vmatpush2.msra.mxu0 0.0
        %814 = vmatprep.subr.mxu0 0.0
        %815 = vmatpush2.msra.mxu0 0.0
        %816 = vmatprep.subr.mxu0 0.0
        %817 = vmatpush2.msra.mxu0 0.0
        %818 = vmatprep.subr.mxu0 0.0
        %819 = vmatpush2.msra.mxu0 0.0
        %820 = vmatprep.subr.mxu0 0.0
        %821 = vmatpush2.msra.mxu0 0.0
        %822 = vmatprep.subr.mxu0 0.0
        %823 = vmatpush2.msra.mxu0 0.0
        %824 = vmatprep.subr.mxu0 0.0
        %825 = vmatpush2.msra.mxu0 0.0
        %826 = vmatprep.subr.mxu0 0.0
        %827 = vmatpush2.msra.mxu0 0.0
        %828 = vmatprep.subr.mxu0 0.0
        %829 = vmatpush2.msra.mxu0 0.0
        %830 = vmatprep.subr.mxu0 0.0
        %831 = vmatpush2.msra.mxu0 0.0
        %832 = vmatprep.subr.mxu0 0.0
        %833 = vmatpush2.msra.mxu0 0.0
        %834 = vmatprep.subr.mxu0 0.0
        %835 = vmatpush2.msra.mxu0 0.0
        %836 = vmatprep.subr.mxu0 0.0
        %837 = vmatpush2.msra.mxu0 0.0
        %838 = vmatprep.subr.mxu0 0.0
        %839 = vmatpush2.msra.mxu0 0.0
        %840 = vmatprep.subr.mxu0 0.0
        %841 = vmatpush2.msra.mxu0 0.0
        %842 = vmatprep.subr.mxu0 0.0
        %843 = vmatpush2.msra.mxu0 0.0
        %844 = vmatprep.mubr.f32.mxu0 0.0
        %845 = vmatmul.mubr.f32.gmra.mxu0 %v769
        %v846 = vpop.f32.mrf.mxu0
        %v847 = vadd.f32 %v750, %v846
        %v848 = vpop.f32.mrf.mxu0
        %v849 = vadd.f32 %v750, %v848
        %850 = vmatprep.mubr.f32.mxu0 0.0
        %851 = vmatmul.mubr.f32.gmra.mxu0 %v772
        %v852 = vpop.f32.mrf.mxu0
        %v853 = vadd.f32 %v755, %v852
        %v854 = vpop.f32.mrf.mxu0
        %v855 = vadd.f32 %v755, %v854
        %856 = vmatprep.mubr.f32.mxu0 0.0
        %857 = vmatmul.mubr.f32.gmra.mxu0 %v775
        %v858 = vpop.f32.mrf.mxu0
        %v859 = vadd.f32 %v760, %v858
        %v860 = vpop.f32.mrf.mxu0
        %v861 = vadd.f32 %v760, %v860
        %862 = vmatprep.mubr.f32.mxu0 0.0
        %863 = vmatmul.mubr.f32.gmra.mxu0 %v778
        %v864 = vpop.f32.mrf.mxu0
        %v865 = vadd.f32 %v765, %v864
        %v866 = vpop.f32.mrf.mxu0
        %v867 = vadd.f32 %v765, %v866
        %868 = vdwg.mxu0
        %v869 = vld [vmem:[%s463] sm:$0x1]
        %v871 = vsel %vm767, %v869, 0
        %873 = vmatprep.subr.mxu0 0.0
        %874 = vmatpush1.msra.mxu0 0.0
        %875 = vmatprep.subr.mxu0 0.0
        %876 = vmatpush1.msra.mxu0 0.0
        %877 = vmatprep.subr.mxu0 0.0
        %878 = vmatpush1.msra.mxu0 0.0
        %879 = vmatprep.subr.mxu0 0.0
        %880 = vmatpush1.msra.mxu0 0.0
        %881 = vmatprep.subr.mxu0 0.0
        %882 = vmatpush1.msra.mxu0 0.0
        %883 = vmatprep.subr.mxu0 0.0
        %884 = vmatpush1.msra.mxu0 0.0
        %885 = vmatprep.subr.mxu0 0.0
        %886 = vmatpush1.msra.mxu0 0.0
        %887 = vmatprep.subr.mxu0 0.0
        %888 = vmatpush1.msra.mxu0 0.0
        %889 = vmatprep.subr.mxu0 0.0
        %890 = vmatpush1.msra.mxu0 0.0
        %891 = vmatprep.subr.mxu0 0.0
        %892 = vmatpush1.msra.mxu0 0.0
        %893 = vmatprep.subr.mxu0 0.0
        %894 = vmatpush1.msra.mxu0 0.0
        %895 = vmatprep.subr.mxu0 0.0
        %896 = vmatpush1.msra.mxu0 0.0
        %897 = vmatprep.subr.mxu0 %v867
        %898 = vmatpush1.msra.mxu0 %v865
        %899 = vmatprep.subr.mxu0 %v861
        %900 = vmatpush1.msra.mxu0 %v859
        %901 = vmatprep.subr.mxu0 %v855
        %902 = vmatpush1.msra.mxu0 %v853
        %903 = vmatprep.subr.mxu0 %v849
        %904 = vmatpush1.msra.mxu0 %v847
        %905 = vmatprep.subr.mxu0 0.0
        %906 = vmatpush2.msra.mxu0 0.0
        %907 = vmatprep.subr.mxu0 0.0
        %908 = vmatpush2.msra.mxu0 0.0
        %909 = vmatprep.subr.mxu0 0.0
        %910 = vmatpush2.msra.mxu0 0.0
        %911 = vmatprep.subr.mxu0 0.0
        %912 = vmatpush2.msra.mxu0 0.0
        %913 = vmatprep.subr.mxu0 0.0
        %914 = vmatpush2.msra.mxu0 0.0
        %915 = vmatprep.subr.mxu0 0.0
        %916 = vmatpush2.msra.mxu0 0.0
        %917 = vmatprep.subr.mxu0 0.0
        %918 = vmatpush2.msra.mxu0 0.0
        %919 = vmatprep.subr.mxu0 0.0
        %920 = vmatpush2.msra.mxu0 0.0
        %921 = vmatprep.subr.mxu0 0.0
        %922 = vmatpush2.msra.mxu0 0.0
        %923 = vmatprep.subr.mxu0 0.0
        %924 = vmatpush2.msra.mxu0 0.0
        %925 = vmatprep.subr.mxu0 0.0
        %926 = vmatpush2.msra.mxu0 0.0
        %927 = vmatprep.subr.mxu0 0.0
        %928 = vmatpush2.msra.mxu0 0.0
        %929 = vmatprep.subr.mxu0 0.0
        %930 = vmatpush2.msra.mxu0 0.0
        %931 = vmatprep.subr.mxu0 0.0
        %932 = vmatpush2.msra.mxu0 0.0
        %933 = vmatprep.subr.mxu0 0.0
        %934 = vmatpush2.msra.mxu0 0.0
        %935 = vmatprep.subr.mxu0 0.0
        %936 = vmatpush2.msra.mxu0 0.0
        %937 = vmatprep.mubr.f32.mxu0 0.0
        %938 = vmatmul.mubr.f32.gmra.mxu0 %v871
        %v939 = vpop.f32.mrf.mxu0
        %v940 = vadd.f32 0.0, %v939
        %v941 = vpop.f32.mrf.mxu0
        %v942 = vadd.f32 0.0, %v941
        %943 = vdwg.mxu0
        %v944 = vmul.f32 %v847, %v847
        %v945 = vmul.f32 %v849, %v849
        %v946 = vmul.f32 %v853, %v853
        %v947 = vmul.f32 %v855, %v855
        %v948 = vmul.f32 %v859, %v859
        %v949 = vmul.f32 %v861, %v861
        %v950 = vmul.f32 %v865, %v865
        %v951 = vmul.f32 %v867, %v867
        %v952 = vand.u32 2147483647, %v940
        %v953 = vand.u32 2147483647, %v942
        %v955 = vsel %vm767, 1.0, 0
        %957 = vmatprep.subr.mxu0 0.0
        %958 = vmatpush1.msra.mxu0 0.0
        %959 = vmatprep.subr.mxu0 0.0
        %960 = vmatpush1.msra.mxu0 0.0
        %961 = vmatprep.subr.mxu0 0.0
        %962 = vmatpush1.msra.mxu0 0.0
        %963 = vmatprep.subr.mxu0 0.0
        %964 = vmatpush1.msra.mxu0 0.0
        %965 = vmatprep.subr.mxu0 0.0
        %966 = vmatpush1.msra.mxu0 0.0
        %967 = vmatprep.subr.mxu0 0.0
        %968 = vmatpush1.msra.mxu0 0.0
        %969 = vmatprep.subr.mxu0 0.0
        %970 = vmatpush1.msra.mxu0 0.0
        %971 = vmatprep.subr.mxu0 0.0
        %972 = vmatpush1.msra.mxu0 0.0
        %973 = vmatprep.subr.mxu0 0.0
        %974 = vmatpush1.msra.mxu0 0.0
        %975 = vmatprep.subr.mxu0 0.0
        %976 = vmatpush1.msra.mxu0 0.0
        %977 = vmatprep.subr.mxu0 0.0
        %978 = vmatpush1.msra.mxu0 0.0
        %979 = vmatprep.subr.mxu0 0.0
        %980 = vmatpush1.msra.mxu0 0.0
        %981 = vmatprep.subr.mxu0 %v951
        %982 = vmatpush1.msra.mxu0 %v950
        %983 = vmatprep.subr.mxu0 %v949
        %984 = vmatpush1.msra.mxu0 %v948
        %985 = vmatprep.subr.mxu0 %v947
        %986 = vmatpush1.msra.mxu0 %v946
        %987 = vmatprep.subr.mxu0 %v945
        %988 = vmatpush1.msra.mxu0 %v944
        %989 = vmatprep.subr.mxu0 0.0
        %990 = vmatpush2.msra.mxu0 0.0
        %991 = vmatprep.subr.mxu0 0.0
        %992 = vmatpush2.msra.mxu0 0.0
        %993 = vmatprep.subr.mxu0 0.0
        %994 = vmatpush2.msra.mxu0 0.0
        %995 = vmatprep.subr.mxu0 0.0
        %996 = vmatpush2.msra.mxu0 0.0
        %997 = vmatprep.subr.mxu0 0.0
        %998 = vmatpush2.msra.mxu0 0.0
        %999 = vmatprep.subr.mxu0 0.0
        %1000 = vmatpush2.msra.mxu0 0.0
        %1001 = vmatprep.subr.mxu0 0.0
        %1002 = vmatpush2.msra.mxu0 0.0
        %1003 = vmatprep.subr.mxu0 0.0
        %1004 = vmatpush2.msra.mxu0 0.0
        %1005 = vmatprep.subr.mxu0 0.0
        %1006 = vmatpush2.msra.mxu0 0.0
        %1007 = vmatprep.subr.mxu0 0.0
        %1008 = vmatpush2.msra.mxu0 0.0
        %1009 = vmatprep.subr.mxu0 0.0
        %1010 = vmatpush2.msra.mxu0 0.0
        %1011 = vmatprep.subr.mxu0 0.0
        %1012 = vmatpush2.msra.mxu0 0.0
        %1013 = vmatprep.subr.mxu0 0.0
        %1014 = vmatpush2.msra.mxu0 0.0
        %1015 = vmatprep.subr.mxu0 0.0
        %1016 = vmatpush2.msra.mxu0 0.0
        %1017 = vmatprep.subr.mxu0 0.0
        %1018 = vmatpush2.msra.mxu0 0.0
        %1019 = vmatprep.subr.mxu0 0.0
        %1020 = vmatpush2.msra.mxu0 0.0
        %1021 = vmatprep.mubr.f32.mxu0 0.0
        %1022 = vmatmul.mubr.f32.gmra.mxu0 %v955
        %v1023 = vpop.f32.mrf.mxu0
        %v1024 = vadd.f32 1e-20, %v1023
        %v1025 = vpop.f32.mrf.mxu0
        %v1026 = vadd.f32 1e-20, %v1025
        %1027 = vdwg.mxu0
        %v1028 = vrsqrt.pop %v1024
        %v1029 = vrsqrt.pop %v1026
        %v1030 = vmul.f32 %v952, %v1028
        %v1031 = vmul.f32 %v953, %v1029
        %v1032 = vld [vmem:[%s467] sm:$0xff]
        %1034 = vset.pattern.permute.xlu0 0
        %1035 = vperm.xlu0 %1034, %v1032
        %v1036 = vpop.permute.xlu0 %1035
        %v1038 = vlaneseq
        %v1039 = vshrl.u32 %v1038, 7
        %v1040 = vsub.s32 0, %v1039
        %v1041 = vrot.slane %v1030, %v1040
        %v1042 = vlaneseq
        %v1043 = vshrl.u32 %v1042, 7
        %v1044 = vsub.s32 0, %v1043
        %v1045 = vrot.slane %v1031, %v1044
        %v1046 = vmul.f32 %v1036, %v1041
        %v1047 = vmul.f32 %v1036, %v1045
        %v1048 = vmul.f32 %v1046, %v470
        %v1049 = vmul.f32 %v1047, %v471
        %1050 = vst [vmem:[%s433] sm:$0xff] %v1048
        %1051 = vst [vmem:[%s433 + $0x8] sm:$0xff] %v1049
        %v1054 = vcombine.low %v1030, %v1031
        %v1056 = vunpack.c.l.s4 1966171168
        %v1057 = vunpack.c.0.s8 %v1056
        %v1058 = vlaneseq
        %v1059 = vshrl.u32 %v1058, 7
        %v1060 = vsub.s32 %v1057, %v1059
        %v1061 = vrot.slane %v1054, %v1060
        %v1063 = vunpack.c.l.s4 1966171168
        %v1064 = vunpack.c.0.s8 %v1063
        %v1065 = vlaneseq
        %v1066 = vshrl.u32 %v1065, 7
        %v1067 = vsub.s32 %v1064, %v1066
        %v1068 = vrot.slane %v1061, %v1067
        %v1070 = vlaneseq
        %vm1071 = vcmp.ge.s32.totalorder %v1070, 0
        %vm1072 = vcmp.lt.s32.totalorder %v1070, 256
        %vm1073 = vmand %vm1071, %vm1072
        %1074 = vst.msk [vmem:[%s440] sm:$0x3] %vm1073, %v1068
        %s1075 = sand.u32 %s263, 1
        %s1076 = scalar_lea.sflag [#allocation3], %s1075
        %s1077 = sand.u32 %s263, 1
        %s1078 = smul.addr %s1077, 16
        %s1079 = scalar_lea.vmem [#allocation2], %s1078
        %s1080 = sand.u32 %s291, 1
        %s1081 = scalar_lea.sflag [#allocation5], %s1080
        %s1082 = sand.u32 %s291, 1
        %s1083 = smul.addr %s1082, 2
        %s1084 = scalar_lea.vmem [#allocation4], %s1083
        // Predicated region
        $region57: #{tpu_custom_call.1} parent=55 // pred_check
          %p1085 = pneg %p273
        $region58: #{tpu_custom_call.1} parent=55 // pred_check_branch
          %1087 = sbr.rel (%p1085) target = $region60
        $region59: #{tpu_custom_call.1} parent=55 // pred_region
          %s1088 = smul.u32 2, %s33
          %s1090 = ssub.s32 256, 256
          %1091 = vsyncadd %s1076, %s1090
          %s1092 = smul.addr %s32, 2
          %s1093 = sadd.s32 %s1088, %s1092
          %s1094 = smul.addr %s1093, 128
          %s1095 = scalar_lea.hbm %s9, %s1094
          %s1097 = sshll.u32 %s1079, 4
          %s1098 = int_to_ptr.vmem [resolvable:$true] %s1097
          %1100 = dma.vmem_to_hbm [thread:$0]  %s1098, 256, %s1095, %s1076
        $region60: #{tpu_custom_call.1} parent=55 // pred_fallthru
          _
        // Predicated region
        $region61: #{tpu_custom_call.1} parent=55 // pred_check
          %p1101 = pneg %p301
        $region62: #{tpu_custom_call.1} parent=55 // pred_check_branch
          %1103 = sbr.rel (%p1101) target = $region64
        $region63: #{tpu_custom_call.1} parent=55 // pred_region
          %s1104 = smul.u32 2, %s33
          %s1106 = ssub.s32 32, 32
          %1107 = vsyncadd %s1081, %s1106
          %s1108 = smul.addr %s32, 2
          %s1109 = sadd.s32 %s1104, %s1108
          %s1110 = smul.addr %s1109, 16
          %s1111 = scalar_lea.hbm %s10, %s1110
          %s1113 = sshll.u32 %s1084, 4
          %s1114 = int_to_ptr.vmem [resolvable:$true] %s1113
          %1116 = dma.vmem_to_hbm [thread:$0]  %s1114, 32, %s1111, %s1081
        $region64: #{tpu_custom_call.1} parent=55 // pred_fallthru
          _
      $region56: #{tpu_custom_call.1} parent=5 // pred_fallthru
        _
      %p1117 = scmp.le.s32.totalorder 2, %s23
      // Predicated region
      $region65: #{tpu_custom_call.1} parent=5 // pred_check
        %p1118 = pneg %p1117
      $region66: #{tpu_custom_call.1} parent=5 // pred_check_branch
        %1120 = sbr.rel (%p1118) target = $region68
      $region67: #{tpu_custom_call.1} parent=5 // pred_region
        %s1121 = ssub.s32 %s23, 2
        // Predicated region
        $region69: #{tpu_custom_call.1} parent=67 // pred_check
          %p1122 = pneg %p279
        $region70: #{tpu_custom_call.1} parent=67 // pred_check_branch
          %1124 = sbr.rel (%p1122) target = $region72
        $region71: #{tpu_custom_call.1} parent=67 // pred_region
          %s1125 = sand.u32 %s264, 1
          %s1126 = scalar_lea.sflag [#allocation3], %s1125
          %s1127 = sand.u32 %s264, 1
          %s1128 = smul.addr %s1127, 16
          %s1129 = scalar_lea.vmem [#allocation2], %s1128
          %1130 = dma.done %s1126, 256
        $region72: #{tpu_custom_call.1} parent=67 // pred_fallthru
          _
        // Predicated region
        $region73: #{tpu_custom_call.1} parent=67 // pred_check
          %p1131 = pneg %p307
        $region74: #{tpu_custom_call.1} parent=67 // pred_check_branch
          %1133 = sbr.rel (%p1131) target = $region76
        $region75: #{tpu_custom_call.1} parent=67 // pred_region
          %s1134 = sand.u32 %s292, 1
          %s1135 = scalar_lea.sflag [#allocation5], %s1134
          %s1136 = sand.u32 %s292, 1
          %s1137 = smul.addr %s1136, 2
          %s1138 = scalar_lea.vmem [#allocation4], %s1137
          %1139 = dma.done %s1135, 32
        $region76: #{tpu_custom_call.1} parent=67 // pred_fallthru
          _
      $region68: #{tpu_custom_call.1} parent=5 // pred_fallthru
        _
    $region6: #{tpu_custom_call.1} parent=1 // loop_footer
      %s27 = sadd.s32 1, %s23
    $region7: #{tpu_custom_call.1} parent=1 // loop_footer_branch
      %22 = sbr.rel target = $region3
    $region8: #{tpu_custom_call.1} parent=1 // loop_exit
      _
    %1140 = vsyncpa [#allocation3], 1
    %s1141 = scalar_lea.sflag [#allocation3], 1
    %1142 = vsyncpa %s1141, 1
    %1143 = vsyncpa [#allocation5], 1
    %s1144 = scalar_lea.sflag [#allocation5], 1
    %1145 = vsyncpa %s1144, 1

</llo_original>
